<compile_context>
chip_gen: v6e
topology: v6e:2x2x1
jax: 0.10.0
libtpu: 0.0.40
codegen_flags: <defaults>
</compile_context>

<pallas_src>
import jax
import jax.numpy as jnp
from jax import lax
from jax.experimental import pallas as pl
from jax.experimental.pallas import tpu as pltpu


def _round_up(x, m):
    return ((x + m - 1) // m) * m


# ------------------------------------------------------ k >= d (Gram) kernel
def _affinity_w_kernel(x_ref, y_ref, w_ref, o_ref, xw_ref):
    # x_ref: (TN, d), y_ref: (TM, d), w_ref: (d, d), o_ref: (TN, TM),
    # xw_ref: VMEM scratch (TN, d) holding X_tile @ W for the current N-tile.
    @pl.when(pl.program_id(2) == 0)
    def _():
        # (TN, d) @ (d, d) with f32 accumulation on the MXU; computed only on
        # the first M-tile of this (batch, N-tile) and reused afterwards.
        xw_ref[...] = jnp.dot(
            x_ref[...], w_ref[...], preferred_element_type=jnp.float32
        ).astype(xw_ref.dtype)

    # Contract d on the LAST dim of both xw and y -> (TN, TM); no explicit
    # Y^T materialization (avoids vxpose + an extra VMEM tile).
    m = lax.dot_general(
        xw_ref[...], y_ref[...],
        dimension_numbers=(((1,), (1,)), ((), ())),
        preferred_element_type=jnp.float32,
    )
    o_ref[...] = jnp.maximum(m, 0.0).astype(o_ref.dtype)


# ------------------------------------------------ k < d (factorized) kernel
def _affinity_lowrank_kernel(p_ref, q_ref, o_ref):
    # p_ref: (TN, k) = (X @ A) tile, q_ref: (TM, k) = (Y @ A) tile.
    m = lax.dot_general(
        p_ref[...], q_ref[...],
        dimension_numbers=(((1,), (1,)), ((), ())),
        preferred_element_type=jnp.float32,
    )
    o_ref[...] = jnp.maximum(m, 0.0).astype(o_ref.dtype)


def affinity_lr(X, Y, A, *, tn=None, tm=None, out_dtype=None):
    """relu(X @ (A @ A^T) @ Y^T).squeeze() computed with a Pallas TPU kernel.

    X: (B, N, d), Y: (B, M, d), A: (d, k).
    tn / tm  : optional N / M tile sizes (default 512).  For very large tiles
               on v5e (scoped VMEM default 16 MiB) the wrapper raises
               vmem_limit_bytes automatically.
    out_dtype: output dtype (defaults to X.dtype; pass jnp.bfloat16 to halve
               the dominant output HBM traffic if downstream numerics allow —
               the ReLU/max is always done in f32 before the final cast).
    """
    B, N, d = X.shape
    Bm, M, dY = Y.shape
    assert B == Bm and d == dY and A.shape[0] == d
    k = A.shape[1]
    out_dtype = out_dtype or X.dtype

    # ---- tile sizes -------------------------------------------------------
    # TN: multiple of 8 (sublane, f32; 512 default is also a multiple of 16
    # for bf16 packing).  TM: multiple of 128 (lane-dense stores) unless the
    # whole M dim is smaller than a lane, in which case use the full dim.
    TN = min(_round_up(tn or 512, 8), _round_up(N, 8))
    if M <= 128:
        TM = M
    else:
        TM = min(_round_up(tm or 512, 128), _round_up(M, 128))

    grid = (B, pl.cdiv(N, TN), pl.cdiv(M, TM))

    itemsize = jnp.dtype(X.dtype).itemsize
    out_itemsize = jnp.dtype(out_dtype).itemsize
    n_tiles_i = pl.cdiv(N, TN)

    if k < d:
        # ---- factorized path: contract the big matmul over k -------------
        P = jnp.einsum("bnd,dk->bnk", X, A)   # (B, N, k), plain XLA
        Q = jnp.einsum("bmd,dk->bmk", Y, A)   # (B, M, k), plain XLA
        r = k
        kernel = _affinity_lowrank_kernel
        in_specs = [
            pl.BlockSpec((None, TN, r), lambda b, i, j: (b, i, 0)),
            pl.BlockSpec((None, TM, r), lambda b, i, j: (b, j, 0)),
        ]
        args = (P, Q)
        scratch_shapes = []
        dims = ("parallel", "parallel", "parallel")
        flops = 2 * B * N * M * r
        bytes_accessed = (B * N * r + B * n_tiles_i * M * r) * itemsize \
            + B * N * M * out_itemsize
        w_bytes = 0
    else:
        # ---- Gram path: W = A @ A^T built in plain XLA (tiny) ------------
        W = jnp.dot(A, jnp.swapaxes(A, 0, 1))  # (d, d)
        r = d
        kernel = _affinity_w_kernel
        in_specs = [
            pl.BlockSpec((None, TN, d), lambda b, i, j: (b, i, 0)),
            pl.BlockSpec((None, TM, d), lambda b, i, j: (b, j, 0)),
            pl.BlockSpec((d, d), lambda b, i, j: (0, 0)),
        ]
        args = (X, Y, W)
        scratch_shapes = [pltpu.VMEM((TN, d), X.dtype)]
        # j (M-tile) axis must be "arbitrary" so a core always starts a row at
        # j == 0 (the xw scratch is filled there).
        dims = ("parallel", "parallel", "arbitrary")
        flops = 2 * B * N * M * d + 2 * B * n_tiles_i * TN * d * d
        bytes_accessed = (B * N * d + B * n_tiles_i * M * d) * itemsize \
            + B * N * M * out_itemsize
        w_bytes = d * d * itemsize

    # ---- compiler params --------------------------------------------------
    # Rough per-call VMEM footprint: double-buffered input/output tiles, the
    # f32 matmul intermediate, the xw scratch and the resident W.
    vmem_est = (
        2 * (TN * r + TM * r) * itemsize
        + 2 * TN * TM * out_itemsize
        + TN * TM * 4
        + TN * r * itemsize
        + 2 * w_bytes
    )
    cp_kwargs = dict(dimension_semantics=dims)
    if vmem_est > (12 << 20):
        # Only needed for very large user-requested tiles (e.g. >512 on v5e,
        # whose scoped VMEM default is 16 MiB).
        cp_kwargs["vmem_limit_bytes"] = min(int(vmem_est * 3 // 2) + (2 << 20),
                                            60 << 20)

    out = pl.pallas_call(
        kernel,
        out_shape=jax.ShapeDtypeStruct((B, N, M), out_dtype),
        grid_spec=pltpu.PrefetchScalarGridSpec(
            num_scalar_prefetch=0,
            grid=grid,
            in_specs=in_specs,
            # Leading batch dim squeezed out of the kernel refs (None block dim).
            out_specs=pl.BlockSpec((None, TN, TM), lambda b, i, j: (b, i, j)),
            scratch_shapes=scratch_shapes,
        ),
        compiler_params=pltpu.CompilerParams(**cp_kwargs),
        cost_estimate=pl.CostEstimate(
            flops=int(flops), transcendentals=0,
            bytes_accessed=int(bytes_accessed + w_bytes),
        ),
    )(*args)

    # Match torch's `.squeeze()` on the result.
    return jnp.squeeze(out)


if __name__ == "__main__":
    key = jax.random.PRNGKey(0)

    # --- Case 1: k >= d (the module's usual regime; Gram-matrix path) ------
    B, N, M_len, d, k = 2, 8, 8, 32, 64
    kx, ky, ka, key = jax.random.split(key, 4)
    X = jax.random.normal(kx, (B, N, d), dtype=jnp.float32)
    Y = jax.random.normal(ky, (B, M_len, d), dtype=jnp.float32)
    # Parameter init matching reset_parameters(): uniform(-1/sqrt(d), 1/sqrt(d)).
    stdv = 1.0 / (d ** 0.5)
    A = jax.random.uniform(ka, (d, k), minval=-stdv, maxval=stdv, dtype=jnp.float32)

    out = jax.block_until_ready(affinity_lr(X, Y, A))
    ref = jnp.squeeze(jnp.maximum(jnp.einsum("bnd,de,bme->bnm", X, A @ A.T, Y), 0.0))
    assert out.shape == ref.shape == (B, N, M_len)
    assert jnp.allclose(out, ref, atol=1e-4, rtol=1e-4)

    # --- Case 2: k < d (factorized path) with ragged N/M (partial blocks) --
    B2, N2, M2, d2, k2 = 2, 9, 11, 32, 16
    kx2, ky2, ka2, key = jax.random.split(key, 4)
    X2 = jax.random.normal(kx2, (B2, N2, d2), dtype=jnp.float32)
    Y2 = jax.random.normal(ky2, (B2, M2, d2), dtype=jnp.float32)
    stdv2 = 1.0 / (d2 ** 0.5)
    A2 = jax.random.uniform(ka2, (d2, k2), minval=-stdv2, maxval=stdv2,
                            dtype=jnp.float32)

    out2 = jax.block_until_ready(affinity_lr(X2, Y2, A2))
    ref2 = jnp.squeeze(jnp.maximum(jnp.einsum("bnd,de,bme->bnm", X2, A2 @ A2.T, Y2), 0.0))
    assert out2.shape == ref2.shape == (B2, N2, M2)
    assert jnp.allclose(out2, ref2, atol=1e-4, rtol=1e-4)

    print("KERNEL_OK")
</pallas_src>

<mosaic_0001>
module attributes {stable_mosaic.version = 11 : i64} {
  func.func @_affinity_w_kernel(%arg0: i32, %arg1: i32, %arg2: i32, %arg3: memref<1x8x32xf32, #tpu.memory_space<vmem>>, %arg4: memref<1x8x32xf32, #tpu.memory_space<vmem>>, %arg5: memref<32x32xf32, #tpu.memory_space<vmem>>, %arg6: memref<1x8x8xf32, #tpu.memory_space<vmem>>, %arg7: memref<8x32xf32, #tpu.memory_space<vmem>>) attributes {dimension_semantics = [#tpu.dimension_semantics<parallel>, #tpu.dimension_semantics<parallel>, #tpu.dimension_semantics<arbitrary>], iteration_bounds = array<i64: 2, 1, 1>, scalar_prefetch = 0 : i64, scratch_operands = 1 : i64, tpu.core_type = #tpu.core_type<tc>, window_params = [{transform_indices = @transform_0, window_bounds = array<i64: 1, 8, 32>}, {transform_indices = @transform_1, window_bounds = array<i64: 1, 8, 32>}, {pipeline_mode = #tpu.pipeline_mode<synchronous>, transform_indices = @transform_2, window_bounds = array<i64: 32, 32>}, {transform_indices = @transform_3, window_bounds = array<i64: 1, 8, 8>}]} {
    %c0_i32 = arith.constant 0 : i32
    %0 = arith.cmpi eq, %arg2, %c0_i32 : i32
    %1 = arith.extui %0 : i1 to i32
    %c0_i32_0 = arith.constant 0 : i32
    %2 = arith.cmpi ne, %1, %c0_i32_0 : i32
    scf.if %2 {
      %c0_9 = arith.constant 0 : index
      %c0_10 = arith.constant 0 : index
      %c0_11 = arith.constant 0 : index
      %12 = vector.load %arg3[%c0_9, %c0_10, %c0_11] : memref<1x8x32xf32, #tpu.memory_space<vmem>>, vector<1x8x32xf32>
      %13 = vector.shape_cast %12 : vector<1x8x32xf32> to vector<8x32xf32>
      %c0_12 = arith.constant 0 : index
      %c0_13 = arith.constant 0 : index
      %14 = vector.load %arg5[%c0_12, %c0_13] : memref<32x32xf32, #tpu.memory_space<vmem>>, vector<32x32xf32>
      %cst_14 = arith.constant dense<0.000000e+00> : vector<8x32xf32>
      %15 = tpu.matmul %13, %14, %cst_14 {dimension_numbers = #tpu.dot_dimension_numbers<[1], [0], [0], [1], [0, 0, 1, 1], [], []>} : vector<8x32xf32>, vector<32x32xf32>, vector<8x32xf32> -> vector<8x32xf32>
      %c0_15 = arith.constant 0 : index
      %c0_16 = arith.constant 0 : index
      %16 = vector.load %arg7[%c0_15, %c0_16] : memref<8x32xf32, #tpu.memory_space<vmem>>, vector<8x32xf32>
      tpu.vector_store %arg7[%c0_15, %c0_16], %15 {strides = array<i32>} : memref<8x32xf32, #tpu.memory_space<vmem>>, vector<8x32xf32>,
    } else {
    }
    %c0 = arith.constant 0 : index
    %c0_1 = arith.constant 0 : index
    %3 = vector.load %arg7[%c0, %c0_1] : memref<8x32xf32, #tpu.memory_space<vmem>>, vector<8x32xf32>
    %c0_2 = arith.constant 0 : index
    %c0_3 = arith.constant 0 : index
    %c0_4 = arith.constant 0 : index
    %4 = vector.load %arg4[%c0_2, %c0_3, %c0_4] : memref<1x8x32xf32, #tpu.memory_space<vmem>>, vector<1x8x32xf32>
    %5 = vector.shape_cast %4 : vector<1x8x32xf32> to vector<8x32xf32>
    %cst = arith.constant dense<0.000000e+00> : vector<8x8xf32>
    %6 = tpu.matmul %3, %5, %cst {dimension_numbers = #tpu.dot_dimension_numbers<[1], [1], [0], [0], [0, 0, 1, 0], [], []>} : vector<8x32xf32>, vector<8x32xf32>, vector<8x8xf32> -> vector<8x8xf32>
    %cst_5 = arith.constant 0.000000e+00 : f32
    %7 = vector.broadcast %cst_5 : f32 to vector<8x8xf32>
    %8 = arith.maximumf %6, %7 : vector<8x8xf32>
    %c0_6 = arith.constant 0 : index
    %c0_7 = arith.constant 0 : index
    %c0_8 = arith.constant 0 : index
    %9 = vector.load %arg6[%c0_6, %c0_7, %c0_8] : memref<1x8x8xf32, #tpu.memory_space<vmem>>, vector<1x8x8xf32>
    %10 = vector.shape_cast %9 : vector<1x8x8xf32> to vector<8x8xf32>
    %11 = vector.shape_cast %8 : vector<8x8xf32> to vector<1x8x8xf32>
    tpu.vector_store %arg6[%c0_6, %c0_7, %c0_8], %11 {strides = array<i32>} : memref<1x8x8xf32, #tpu.memory_space<vmem>>, vector<1x8x8xf32>,
    return
  }
  func.func @transform_0(%arg0: i32, %arg1: i32, %arg2: i32) -> (i32, i32, i32) {
    %c0_i32 = arith.constant 0 : i32
    %c0_i32_0 = arith.constant 0 : i32
    return %arg0, %arg1, %c0_i32 : i32, i32, i32
  }
  func.func @transform_1(%arg0: i32, %arg1: i32, %arg2: i32) -> (i32, i32, i32) {
    %c0_i32 = arith.constant 0 : i32
    %c0_i32_0 = arith.constant 0 : i32
    return %arg0, %arg2, %c0_i32 : i32, i32, i32
  }
  func.func @transform_2(%arg0: i32, %arg1: i32, %arg2: i32) -> (i32, i32) {
    %c0_i32 = arith.constant 0 : i32
    %c0_i32_0 = arith.constant 0 : i32
    %c0_i32_1 = arith.constant 0 : i32
    return %c0_i32, %c0_i32_0 : i32, i32
  }
  func.func @transform_3(%arg0: i32, %arg1: i32, %arg2: i32) -> (i32, i32, i32) {
    %c0_i32 = arith.constant 0 : i32
    return %arg0, %arg1, %arg2 : i32, i32, i32
  }
}

</mosaic_0001>

<llo_original>
// kernel: tpu_custom_call.1
$region0: #{tpu_custom_call.1}
  #allocation0 [shape = 'u32[]', space=smem, size = 0x4, offset = 0x4, fixed_abs, tag = 'smem constant byte address 0x4 - core index']
  #allocation1 [shape = 'u32[144,128]{1,0:T(1,128)}', space=vmem, size = 0x12000, scoped, tag = 'internal scratch']
  #allocation2 [shape = 'f32[8,32]{1,0:T(8,128)}', space=vmem, size = 0x1000, scoped, tag = 'scratch operand']
  %s0 = inlined_call_operand.hbm [shape: f32[2,8,32], index: 0, kind: input, shape index: {}]
  %s1 = inlined_call_operand.hbm [shape: f32[2,8,32], index: 1, kind: input, shape index: {}]
  %s2 = inlined_call_operand.hbm [shape: f32[32,32], index: 2, kind: input, shape index: {}]
  %s3 = inlined_call_operand.hbm [shape: f32[2,8,8], index: 3, kind: output, shape index: {}]
  %s4 = sld [smem:[#allocation0]]
  $region61: #{tpu_custom_call.1} parent=0
    _
  %s6 = ssub.s32 1, %s4
  %s7 = scalar_select 0, %s6, %s4
  $region1: #{tpu_custom_call.1} parent=0
    #allocation3 [shape = 'u8[8192]{0}', space=vmem, size = 0x2000, scoped, tag = 'input window, operand 0']
    #allocation4 [shape = 's32[2]{0}', space=sflag, size = 0x8, scoped, tag = 'scoped memory for tpu_custom_call.1']
    #allocation5 [shape = 's32[2]{0}', space=sflag, size = 0x8, scoped, tag = 'scoped memory for tpu_custom_call.1']
    #allocation6 [shape = 'u8[8192]{0}', space=vmem, size = 0x2000, scoped, tag = 'input window, operand 1']
    #allocation7 [shape = 's32[2]{0}', space=sflag, size = 0x8, scoped, tag = 'scoped memory for tpu_custom_call.1']
    #allocation8 [shape = 'u8[16384]{0}', space=vmem, size = 0x4000, scoped, tag = 'input window, operand 2, single buffered']
    #allocation9 [shape = 'u8[8192]{0}', space=vmem, size = 0x2000, scoped, tag = 'output window, operand 0']
    %8 = vsyncpa [#allocation4], 0
    %s9 = scalar_lea.sflag [#allocation4], 1
    %10 = vsyncpa %s9, 0
    %11 = vsyncpa [#allocation7], 0
    %s12 = scalar_lea.sflag [#allocation7], 1
    %13 = vsyncpa %s12, 0
    %14 = vsyncpa [#allocation5], 0
    %s15 = scalar_lea.sflag [#allocation5], 1
    %16 = vsyncpa %s15, 0
    loop: start=0, step=1, limit=4
    $region2: #{tpu_custom_call.1} parent=1 // loop_pre_header
      _
    $region3: #{tpu_custom_call.1} parent=1 // loop_header
      %s18 = sphi 0, %s22
      %p19 = scmp.ge.s32.totalorder %s18, 4
      %s25 = sphi 0, %s44
      %s26 = sphi 0, %s40
      %s27 = sphi 0, %s36
      %s28 = sphi 0, %s25
      %s29 = sphi 0, %s26
      %s30 = sphi 0, %s27
      %s31 = sphi 0, %s28
      %s32 = sphi 0, %s29
      %s33 = sphi 0, %s30
      %s49 = sphi 0, %s51
      %s52 = sphi 0, %s49
      %s53 = sphi 0, %s52
      %s69 = sphi 0, %s53
      %s77 = sphi 0, %s79
      %s80 = sphi 0, %s77
      %s81 = sphi 0, %s80
      %s97 = sphi 0, %s81
      %s101 = sphi 0, %s101
      %s103 = sphi 0, %s101
      %s104 = sphi 0, %s103
      %s118 = sphi 0, %s104
      %s128 = sphi 0, %s130
      %s131 = sphi 0, %s128
      %s132 = sphi 0, %s131
      %s148 = sphi 0, %s132
    $region4: #{tpu_custom_call.1} parent=1 // loop_header_branch
      %21 = sbr.rel (%p19) target = $region8
    $region5: #{tpu_custom_call.1} parent=1 // loop_body
      %s23 = ssub.s32 %s18, 1
      %s24 = ssub.s32 %s18, 2
      %s34 = sadd.s32 1, %s27
      %p35 = scmp.ge.s32.totalorder %s34, 1
      %s36 = scalar_select %p35, 0, %s34
      %s37 = sadd.s32 1, %s26
      %s38 = scalar_select %p35, %s37, %s26
      %p39 = scmp.ge.s32.totalorder %s38, 1
      %s40 = scalar_select %p39, 0, %s38
      %s41 = sadd.s32 1, %s25
      %s42 = scalar_select %p39, %s41, %s25
      %p43 = scmp.ge.s32.totalorder %s42, 2
      %s44 = scalar_select %p43, 0, %s42
      %s45 = ssub.s32 %s25, %s44
      %s46 = ssub.s32 %s26, %s40
      %s47 = sor.u32 %s45, %s46
      %p48 = scmp.eq.s32.totalorder %s47, 0
      %s50 = sadd.s32 %s49, 1
      %s51 = scalar_select %p48, %s49, %s50
      %p54 = pneg %p48
      %p55 = scmp.eq.s32.totalorder %s18, 1
      %p56 = por %p54, %p55
      %p57 = scmp.ne.s32.totalorder %s49, %s52
      %p58 = scmp.eq.s32.totalorder %s18, 0
      %p59 = por %p57, %p58
      %p60 = scmp.ne.s32.totalorder %s49, %s52
      %p61 = scmp.eq.s32.totalorder %s23, 1
      %p62 = por %p60, %p61
      %p63 = scmp.ne.s32.totalorder %s52, %s53
      %p64 = scmp.eq.s32.totalorder %s23, 0
      %p65 = por %p63, %p64
      %p66 = scmp.ne.s32.totalorder %s52, %s53
      %p67 = scmp.eq.s32.totalorder %s24, 1
      %p68 = por %p66, %p67
      %p70 = scmp.ne.s32.totalorder %s53, %s69
      %p71 = scmp.eq.s32.totalorder %s24, 0
      %p72 = por %p70, %p71
      %s73 = ssub.s32 %s25, %s44
      %s74 = ssub.s32 %s27, %s36
      %s75 = sor.u32 %s73, %s74
      %p76 = scmp.eq.s32.totalorder %s75, 0
      %s78 = sadd.s32 %s77, 1
      %s79 = scalar_select %p76, %s77, %s78
      %p82 = pneg %p76
      %p83 = scmp.eq.s32.totalorder %s18, 1
      %p84 = por %p82, %p83
      %p85 = scmp.ne.s32.totalorder %s77, %s80
      %p86 = scmp.eq.s32.totalorder %s18, 0
      %p87 = por %p85, %p86
      %p88 = scmp.ne.s32.totalorder %s77, %s80
      %p89 = scmp.eq.s32.totalorder %s23, 1
      %p90 = por %p88, %p89
      %p91 = scmp.ne.s32.totalorder %s80, %s81
      %p92 = scmp.eq.s32.totalorder %s23, 0
      %p93 = por %p91, %p92
      %p94 = scmp.ne.s32.totalorder %s80, %s81
      %p95 = scmp.eq.s32.totalorder %s24, 1
      %p96 = por %p94, %p95
      %p98 = scmp.ne.s32.totalorder %s81, %s97
      %p99 = scmp.eq.s32.totalorder %s24, 0
      %p100 = por %p98, %p99
      %s102 = sadd.s32 %s101, 1
      %p105 = scmp.eq.s32.totalorder %s18, 1
      %p106 = scmp.ne.s32.totalorder %s101, %s103
      %p107 = scmp.eq.s32.totalorder %s18, 0
      %p108 = por %p106, %p107
      %p109 = scmp.ne.s32.totalorder %s101, %s103
      %p110 = scmp.eq.s32.totalorder %s23, 1
      %p111 = por %p109, %p110
      %p112 = scmp.ne.s32.totalorder %s103, %s104
      %p113 = scmp.eq.s32.totalorder %s23, 0
      %p114 = por %p112, %p113
      %p115 = scmp.ne.s32.totalorder %s103, %s104
      %p116 = scmp.eq.s32.totalorder %s24, 1
      %p117 = por %p115, %p116
      %p119 = scmp.ne.s32.totalorder %s104, %s118
      %p120 = scmp.eq.s32.totalorder %s24, 0
      %p121 = por %p119, %p120
      %s122 = ssub.s32 %s25, %s44
      %s123 = ssub.s32 %s26, %s40
      %s124 = sor.u32 %s122, %s123
      %s125 = ssub.s32 %s27, %s36
      %s126 = sor.u32 %s124, %s125
      %p127 = scmp.eq.s32.totalorder %s126, 0
      %s129 = sadd.s32 %s128, 1
      %s130 = scalar_select %p127, %s128, %s129
      %p133 = pneg %p127
      %p134 = scmp.eq.s32.totalorder %s18, 1
      %p135 = por %p133, %p134
      %p136 = scmp.ne.s32.totalorder %s128, %s131
      %p137 = scmp.eq.s32.totalorder %s18, 0
      %p138 = por %p136, %p137
      %p139 = scmp.ne.s32.totalorder %s128, %s131
      %p140 = scmp.eq.s32.totalorder %s23, 1
      %p141 = por %p139, %p140
      %p142 = scmp.ne.s32.totalorder %s131, %s132
      %p143 = scmp.eq.s32.totalorder %s23, 0
      %p144 = por %p142, %p143
      %p145 = scmp.ne.s32.totalorder %s131, %s132
      %p146 = scmp.eq.s32.totalorder %s24, 1
      %p147 = por %p145, %p146
      %p149 = scmp.ne.s32.totalorder %s132, %s148
      %p150 = scmp.eq.s32.totalorder %s24, 0
      %p151 = por %p149, %p150
      %p152 = scmp.le.s32.totalorder 1, %s18
      %p153 = scmp.lt.s32.totalorder %s18, 3
      %p154 = pnand %p152, %p153
      %p155 = pneg %p154
      // Predicated region
      $region9: #{tpu_custom_call.1} parent=5 // pred_check
        _
      $region10: #{tpu_custom_call.1} parent=5 // pred_check_branch
        %157 = sbr.rel (%p154) target = $region12
      $region11: #{tpu_custom_call.1} parent=5 // pred_region
        %s158 = ssub.s32 %s18, 1
        // Predicated region
        $region13: #{tpu_custom_call.1} parent=11 // pred_check
          %p159 = pneg %p114
        $region14: #{tpu_custom_call.1} parent=11 // pred_check_branch
          %161 = sbr.rel (%p159) target = $region16
        $region15: #{tpu_custom_call.1} parent=11 // pred_region
          %s163 = ssub.s32 512, 512
          %164 = vsyncadd [#allocation7], %s163
          %s165 = sshll.u32 [#allocation8], 4
          %s166 = int_to_ptr.vmem [resolvable:$true] %s165
          %171 = dma.hbm_to_vmem [thread:$0]  %s2, 512, %s166, [#allocation7], 128, 128, 8
        $region16: #{tpu_custom_call.1} parent=11 // pred_fallthru
          _
      $region12: #{tpu_custom_call.1} parent=5 // pred_fallthru
        _
      %p172 = scmp.lt.s32.totalorder %s18, 2
      // Predicated region
      $region17: #{tpu_custom_call.1} parent=5 // pred_check
        %p173 = pneg %p172
      $region18: #{tpu_custom_call.1} parent=5 // pred_check_branch
        %175 = sbr.rel (%p173) target = $region20
      $region19: #{tpu_custom_call.1} parent=5 // pred_region
        // Predicated region
        $region21: #{tpu_custom_call.1} parent=19 // pred_check
          %p176 = pneg %p59
        $region22: #{tpu_custom_call.1} parent=19 // pred_check_branch
          %178 = sbr.rel (%p176) target = $region24
        $region23: #{tpu_custom_call.1} parent=19 // pred_region
          %s179 = sand.u32 %s49, 1
          %s180 = scalar_lea.sflag [#allocation4], %s179
          %s181 = sand.u32 %s49, 1
          %s182 = smul.addr %s181, 8
          %s183 = scalar_lea.vmem [#allocation3], %s182
          %s185 = ssub.s32 128, 128
          %186 = vsyncadd %s180, %s185
          %s187 = sadd.s32 %s26, %s25
          %s188 = smul.addr %s187, 128
          %s189 = scalar_lea.hbm %s0, %s188
          %s191 = sshll.u32 %s183, 4
          %s192 = int_to_ptr.vmem [resolvable:$true] %s191
          %194 = dma.hbm_to_vmem [thread:$0]  %s189, 128, %s192, %s180
        $region24: #{tpu_custom_call.1} parent=19 // pred_fallthru
          _
        // Predicated region
        $region25: #{tpu_custom_call.1} parent=19 // pred_check
          %p195 = pneg %p87
        $region26: #{tpu_custom_call.1} parent=19 // pred_check_branch
          %197 = sbr.rel (%p195) target = $region28
        $region27: #{tpu_custom_call.1} parent=19 // pred_region
          %s198 = sand.u32 %s18, 1
          %s199 = scalar_lea.sflag [#allocation7], %s198
          %s200 = sand.u32 %s77, 1
          %s201 = smul.addr %s200, 8
          %s202 = scalar_lea.vmem [#allocation6], %s201
          %s204 = ssub.s32 128, 128
          %205 = vsyncadd %s199, %s204
          %s206 = sadd.s32 %s27, %s25
          %s207 = smul.addr %s206, 128
          %s208 = scalar_lea.hbm %s1, %s207
          %s210 = sshll.u32 %s202, 4
          %s211 = int_to_ptr.vmem [resolvable:$true] %s210
          %213 = dma.hbm_to_vmem [thread:$0]  %s208, 128, %s211, %s199
        $region28: #{tpu_custom_call.1} parent=19 // pred_fallthru
          _
      $region20: #{tpu_custom_call.1} parent=5 // pred_fallthru
        _
      %p214 = scmp.le.s32.totalorder 1, %s18
      %p215 = scmp.lt.s32.totalorder %s18, 3
      %p216 = pnand %p214, %p215
      %p217 = pneg %p216
      // Predicated region
      $region29: #{tpu_custom_call.1} parent=5 // pred_check
        _
      $region30: #{tpu_custom_call.1} parent=5 // pred_check_branch
        %219 = sbr.rel (%p216) target = $region32
      $region31: #{tpu_custom_call.1} parent=5 // pred_region
        %s220 = ssub.s32 %s18, 1
        %s221 = sand.u32 %s52, 1
        %s222 = scalar_lea.sflag [#allocation4], %s221
        %s223 = sand.u32 %s52, 1
        %s224 = smul.addr %s223, 8
        %s225 = scalar_lea.vmem [#allocation3], %s224
        // Predicated region
        $region33: #{tpu_custom_call.1} parent=31 // pred_check
          %p226 = pneg %p65
        $region34: #{tpu_custom_call.1} parent=31 // pred_check_branch
          %228 = sbr.rel (%p226) target = $region36
        $region35: #{tpu_custom_call.1} parent=31 // pred_region
          %229 = dma.done %s222, 128
        $region36: #{tpu_custom_call.1} parent=31 // pred_fallthru
          _
        %s230 = sand.u32 %s23, 1
        %s231 = scalar_lea.sflag [#allocation7], %s230
        %s232 = sand.u32 %s80, 1
        %s233 = smul.addr %s232, 8
        %s234 = scalar_lea.vmem [#allocation6], %s233
        // Predicated region
        $region37: #{tpu_custom_call.1} parent=31 // pred_check
          %p235 = pneg %p93
        $region38: #{tpu_custom_call.1} parent=31 // pred_check_branch
          %237 = sbr.rel (%p235) target = $region40
        $region39: #{tpu_custom_call.1} parent=31 // pred_region
          %238 = dma.done %s231, 128
        $region40: #{tpu_custom_call.1} parent=31 // pred_fallthru
          _
        // Predicated region
        $region41: #{tpu_custom_call.1} parent=31 // pred_check
          %p239 = pneg %p114
        $region42: #{tpu_custom_call.1} parent=31 // pred_check_branch
          %241 = sbr.rel (%p239) target = $region44
        $region43: #{tpu_custom_call.1} parent=31 // pred_region
          %242 = dma.done [#allocation7], 512
        $region44: #{tpu_custom_call.1} parent=31 // pred_fallthru
          _
        %s243 = sand.u32 %s52, 1
        %s244 = scalar_lea.sflag [#allocation4], %s243
        %s245 = sand.u32 %s52, 1
        %s246 = smul.addr %s245, 8
        %s247 = scalar_lea.vmem [#allocation3], %s246
        %p248 = pneg %p65
        %p249 = pneg %p62
        %s250 = sand.u32 %s23, 1
        %s251 = scalar_lea.sflag [#allocation7], %s250
        %s252 = sand.u32 %s80, 1
        %s253 = smul.addr %s252, 8
        %s254 = scalar_lea.vmem [#allocation6], %s253
        %p255 = pneg %p93
        %p256 = pneg %p90
        %p257 = pneg %p114
        %p258 = pneg %p111
        %p259 = pneg %p144
        %p260 = pneg %p141
        %s261 = sand.u32 %s131, 1
        %s262 = scalar_lea.sflag [#allocation5], %s261
        %s263 = sand.u32 %s131, 1
        %s264 = smul.addr %s263, 8
        %s265 = scalar_lea.vmem [#allocation9], %s264
        %p266 = scmp.eq.s32.totalorder %s30, 0
        // Predicated region
        $region45: #{tpu_custom_call.1} parent=31 // pred_check
          %p267 = pneg %p266
        $region46: #{tpu_custom_call.1} parent=31 // pred_check_branch
          %269 = sbr.rel (%p267) target = $region48
        $region47: #{tpu_custom_call.1} parent=31 // pred_region
          %v270 = vld [vmem:[%s225] sm:$0xff]
          %v271 = vld [vmem:[#allocation8] sm:$0xff]
          %v272 = vld [vmem:[#allocation8 + $0x8] sm:$0xff]
          %v273 = vld [vmem:[#allocation8 + $0x10] sm:$0xff]
          %v274 = vld [vmem:[#allocation8 + $0x18] sm:$0xff]
          %vm275 = vcmask 261120
          %v277 = vsel %vm275, %v270, 0
          %279 = vmatprep.subr.mxu0 0.0
          %280 = vmatpush1.msra.mxu0 0.0
          %281 = vmatprep.subr.mxu0 0.0
          %282 = vmatpush1.msra.mxu0 0.0
          %283 = vmatprep.subr.mxu0 0.0
          %284 = vmatpush1.msra.mxu0 0.0
          %285 = vmatprep.subr.mxu0 0.0
          %286 = vmatpush1.msra.mxu0 0.0
          %287 = vmatprep.subr.mxu0 0.0
          %288 = vmatpush1.msra.mxu0 0.0
          %289 = vmatprep.subr.mxu0 0.0
          %290 = vmatpush1.msra.mxu0 0.0
          %291 = vmatprep.subr.mxu0 0.0
          %292 = vmatpush1.msra.mxu0 0.0
          %293 = vmatprep.subr.mxu0 0.0
          %294 = vmatpush1.msra.mxu0 0.0
          %295 = vmatprep.subr.mxu0 0.0
          %296 = vmatpush1.msra.mxu0 0.0
          %297 = vmatprep.subr.mxu0 0.0
          %298 = vmatpush1.msra.mxu0 0.0
          %299 = vmatprep.subr.mxu0 0.0
          %300 = vmatpush1.msra.mxu0 0.0
          %301 = vmatprep.subr.mxu0 0.0
          %302 = vmatpush1.msra.mxu0 0.0
          %303 = vmatprep.subr.mxu0 0.0
          %304 = vmatpush1.msra.mxu0 %v274
          %305 = vmatprep.subr.mxu0 0.0
          %306 = vmatpush1.msra.mxu0 %v273
          %307 = vmatprep.subr.mxu0 0.0
          %308 = vmatpush1.msra.mxu0 %v272
          %309 = vmatprep.subr.mxu0 0.0
          %310 = vmatpush1.msra.mxu0 %v271
          %311 = vmatprep.subr.mxu0 0.0
          %312 = vmatpush2.msra.mxu0 0.0
          %313 = vmatprep.subr.mxu0 0.0
          %314 = vmatpush2.msra.mxu0 0.0
          %315 = vmatprep.subr.mxu0 0.0
          %316 = vmatpush2.msra.mxu0 0.0
          %317 = vmatprep.subr.mxu0 0.0
          %318 = vmatpush2.msra.mxu0 0.0
          %319 = vmatprep.subr.mxu0 0.0
          %320 = vmatpush2.msra.mxu0 0.0
          %321 = vmatprep.subr.mxu0 0.0
          %322 = vmatpush2.msra.mxu0 0.0
          %323 = vmatprep.subr.mxu0 0.0
          %324 = vmatpush2.msra.mxu0 0.0
          %325 = vmatprep.subr.mxu0 0.0
          %326 = vmatpush2.msra.mxu0 0.0
          %327 = vmatprep.subr.mxu0 0.0
          %328 = vmatpush2.msra.mxu0 0.0
          %329 = vmatprep.subr.mxu0 0.0
          %330 = vmatpush2.msra.mxu0 0.0
          %331 = vmatprep.subr.mxu0 0.0
          %332 = vmatpush2.msra.mxu0 0.0
          %333 = vmatprep.subr.mxu0 0.0
          %334 = vmatpush2.msra.mxu0 0.0
          %335 = vmatprep.subr.mxu0 0.0
          %336 = vmatpush2.msra.mxu0 0.0
          %337 = vmatprep.subr.mxu0 0.0
          %338 = vmatpush2.msra.mxu0 0.0
          %339 = vmatprep.subr.mxu0 0.0
          %340 = vmatpush2.msra.mxu0 0.0
          %341 = vmatprep.subr.mxu0 0.0
          %342 = vmatpush2.msra.mxu0 0.0
          %343 = vmatprep.mubr.f32.mxu0 0.0
          %344 = vmatmul.mubr.f32.gmra.mxu0 %v277
          %v345 = vpop.f32.mrf.mxu0
          %v346 = vadd.f32 0.0, %v345
          %v347 = vpop.f32.mrf.mxu0
          %348 = vdwg.mxu0
          %349 = vst.msk [vmem:[#allocation2] sm:$0xff] %vm275, %v346
        $region48: #{tpu_custom_call.1} parent=31 // pred_fallthru
          _
        %v350 = vld [vmem:[#allocation2] sm:$0xff]
        %v351 = vld [vmem:[%s234] sm:$0xff]
        %vm352 = vcmask 261120
        %v354 = vsel %vm352, %v350, 0
        %v357 = vsel %vm352, %v351, 0
        %359 = vmatprep.subr.mxu0 0.0
        %360 = vmatpush1.xpose.msra.mxu0 0.0
        %361 = vmatprep.subr.mxu0 0.0
        %362 = vmatpush1.xpose.msra.mxu0 0.0
        %363 = vmatprep.subr.mxu0 0.0
        %364 = vmatpush1.xpose.msra.mxu0 0.0
        %365 = vmatprep.subr.mxu0 0.0
        %366 = vmatpush1.xpose.msra.mxu0 0.0
        %367 = vmatprep.subr.mxu0 0.0
        %368 = vmatpush1.xpose.msra.mxu0 0.0
        %369 = vmatprep.subr.mxu0 0.0
        %370 = vmatpush1.xpose.msra.mxu0 0.0
        %371 = vmatprep.subr.mxu0 0.0
        %372 = vmatpush1.xpose.msra.mxu0 0.0
        %373 = vmatprep.subr.mxu0 0.0
        %374 = vmatpush1.xpose.msra.mxu0 0.0
        %375 = vmatprep.subr.mxu0 0.0
        %376 = vmatpush1.xpose.msra.mxu0 0.0
        %377 = vmatprep.subr.mxu0 0.0
        %378 = vmatpush1.xpose.msra.mxu0 0.0
        %379 = vmatprep.subr.mxu0 0.0
        %380 = vmatpush1.xpose.msra.mxu0 0.0
        %381 = vmatprep.subr.mxu0 0.0
        %382 = vmatpush1.xpose.msra.mxu0 0.0
        %383 = vmatprep.subr.mxu0 0.0
        %384 = vmatpush1.xpose.msra.mxu0 0.0
        %385 = vmatprep.subr.mxu0 0.0
        %386 = vmatpush1.xpose.msra.mxu0 0.0
        %387 = vmatprep.subr.mxu0 0.0
        %388 = vmatpush1.xpose.msra.mxu0 0.0
        %389 = vmatprep.subr.mxu0 0.0
        %390 = vmatpush1.xpose.msra.mxu0 %v357
        %391 = vmatprep.subr.mxu0 0.0
        %392 = vmatpush2.xpose.msra.mxu0 0.0
        %393 = vmatprep.subr.mxu0 0.0
        %394 = vmatpush2.xpose.msra.mxu0 0.0
        %395 = vmatprep.subr.mxu0 0.0
        %396 = vmatpush2.xpose.msra.mxu0 0.0
        %397 = vmatprep.subr.mxu0 0.0
        %398 = vmatpush2.xpose.msra.mxu0 0.0
        %399 = vmatprep.subr.mxu0 0.0
        %400 = vmatpush2.xpose.msra.mxu0 0.0
        %401 = vmatprep.subr.mxu0 0.0
        %402 = vmatpush2.xpose.msra.mxu0 0.0
        %403 = vmatprep.subr.mxu0 0.0
        %404 = vmatpush2.xpose.msra.mxu0 0.0
        %405 = vmatprep.subr.mxu0 0.0
        %406 = vmatpush2.xpose.msra.mxu0 0.0
        %407 = vmatprep.subr.mxu0 0.0
        %408 = vmatpush2.xpose.msra.mxu0 0.0
        %409 = vmatprep.subr.mxu0 0.0
        %410 = vmatpush2.xpose.msra.mxu0 0.0
        %411 = vmatprep.subr.mxu0 0.0
        %412 = vmatpush2.xpose.msra.mxu0 0.0
        %413 = vmatprep.subr.mxu0 0.0
        %414 = vmatpush2.xpose.msra.mxu0 0.0
        %415 = vmatprep.subr.mxu0 0.0
        %416 = vmatpush2.xpose.msra.mxu0 0.0
        %417 = vmatprep.subr.mxu0 0.0
        %418 = vmatpush2.xpose.msra.mxu0 0.0
        %419 = vmatprep.subr.mxu0 0.0
        %420 = vmatpush2.xpose.msra.mxu0 0.0
        %421 = vmatprep.subr.mxu0 0.0
        %422 = vmatpush2.xpose.msra.mxu0 0.0
        %423 = vmatprep.mubr.f32.mxu0 0.0
        %424 = vmatmul.mubr.f32.gmra.mxu0 %v354
        %v425 = vpop.f32.mrf.mxu0
        %v426 = vadd.f32 0.0, %v425
        %v427 = vpop.f32.mrf.mxu0
        %428 = vdwg.mxu0
        %v429 = vmax.f32 %v426, 0.0
        %vm430 = vcmask 64512
        %431 = vst.msk [vmem:[%s265] sm:$0xff] %vm430, %v429
        %s432 = sand.u32 %s131, 1
        %s433 = scalar_lea.sflag [#allocation5], %s432
        %s434 = sand.u32 %s131, 1
        %s435 = smul.addr %s434, 8
        %s436 = scalar_lea.vmem [#allocation9], %s435
        // Predicated region
        $region49: #{tpu_custom_call.1} parent=31 // pred_check
          %p437 = pneg %p141
        $region50: #{tpu_custom_call.1} parent=31 // pred_check_branch
          %439 = sbr.rel (%p437) target = $region52
        $region51: #{tpu_custom_call.1} parent=31 // pred_region
          %s441 = ssub.s32 128, 128
          %442 = vsyncadd %s433, %s441
          %s443 = sadd.s32 %s30, %s29
          %s444 = sadd.s32 %s443, %s28
          %s445 = smul.addr %s444, 128
          %s446 = scalar_lea.hbm %s3, %s445
          %s448 = sshll.u32 %s436, 4
          %s449 = int_to_ptr.vmem [resolvable:$true] %s448
          %451 = dma.vmem_to_hbm [thread:$0]  %s449, 128, %s446, %s433
        $region52: #{tpu_custom_call.1} parent=31 // pred_fallthru
          _
      $region32: #{tpu_custom_call.1} parent=5 // pred_fallthru
        _
      %p452 = scmp.le.s32.totalorder 2, %s18
      // Predicated region
      $region53: #{tpu_custom_call.1} parent=5 // pred_check
        %p453 = pneg %p452
      $region54: #{tpu_custom_call.1} parent=5 // pred_check_branch
        %455 = sbr.rel (%p453) target = $region56
      $region55: #{tpu_custom_call.1} parent=5 // pred_region
        %s456 = ssub.s32 %s18, 2
        // Predicated region
        $region57: #{tpu_custom_call.1} parent=55 // pred_check
          %p457 = pneg %p147
        $region58: #{tpu_custom_call.1} parent=55 // pred_check_branch
          %459 = sbr.rel (%p457) target = $region60
        $region59: #{tpu_custom_call.1} parent=55 // pred_region
          %s460 = sand.u32 %s132, 1
          %s461 = scalar_lea.sflag [#allocation5], %s460
          %s462 = sand.u32 %s132, 1
          %s463 = smul.addr %s462, 8
          %s464 = scalar_lea.vmem [#allocation9], %s463
          %465 = dma.done %s461, 128
        $region60: #{tpu_custom_call.1} parent=55 // pred_fallthru
          _
      $region56: #{tpu_custom_call.1} parent=5 // pred_fallthru
        _
    $region6: #{tpu_custom_call.1} parent=1 // loop_footer
      %s22 = sadd.s32 1, %s18
    $region7: #{tpu_custom_call.1} parent=1 // loop_footer_branch
      %17 = sbr.rel target = $region3
    $region8: #{tpu_custom_call.1} parent=1 // loop_exit
      _
    %466 = vsyncpa [#allocation4], 1
    %s467 = scalar_lea.sflag [#allocation4], 1
    %468 = vsyncpa %s467, 1
    %469 = vsyncpa [#allocation7], 1
    %s470 = scalar_lea.sflag [#allocation7], 1
    %471 = vsyncpa %s470, 1
    %472 = vsyncpa [#allocation5], 1
    %s473 = scalar_lea.sflag [#allocation5], 1
    %474 = vsyncpa %s473, 1

</llo_original>
